<compile_context>
chip_gen: v7x
topology: tpu7x:2x2x1
jax: 0.10.0
libtpu: 0.0.40
codegen_flags: <defaults>
</compile_context>

<pallas_src>
import random

import jax
import jax.numpy as jnp
from jax.experimental import pallas as pl
from jax.experimental.pallas import tpu as pltpu


def _add_scaled_noise_kernel(std_ref, x_ref, z_ref, o_ref):
    # std_ref: (1,) f32 in SMEM (scalar prefetch); x/z/o: (C, T_BLK) VMEM tiles.
    o_ref[...] = x_ref[...] + std_ref[0] * z_ref[...]


def add_gaussian_noise_snr(signal, key, snr_db=2.0, p=1.0, block_time=2048):
    """signal: [channels, time] float32. Returns noisy signal, same shape."""
    # Host-side TakeDice gate (Python randomness, exactly like the module).
    # With the default p=1.0 the noise branch is always taken.
    if random.random() >= p:
        return signal

    signal = signal.astype(jnp.float32)
    C, T = signal.shape

    # --- hoisted global reduction (plain XLA, trivially mem-bound) ---
    signal_power = jnp.mean(jnp.square(signal))
    inv_snr_linear = jnp.float32(10.0 ** (-snr_db / 10.0))  # fold 1/snr_linear
    noise_std = jnp.sqrt(signal_power * inv_snr_linear).reshape((1,))

    # --- hoisted standard-normal draw (XLA PRNG) ---
    z = jax.random.normal(key, (C, T), dtype=jnp.float32)

    # Lane-dense time tiling: T_BLK multiple of 128, or the full time axis.
    t_blk = int(min(block_time, T))
    if T % t_blk != 0 or t_blk % 128 != 0:
        t_blk = T
    grid = (T // t_blk,)

    return pl.pallas_call(
        _add_scaled_noise_kernel,
        out_shape=jax.ShapeDtypeStruct((C, T), jnp.float32),
        grid_spec=pltpu.PrefetchScalarGridSpec(
            num_scalar_prefetch=1,  # noise_std -> SMEM
            grid=grid,
            in_specs=[
                pl.BlockSpec((C, t_blk), lambda i, std: (0, i)),  # signal
                pl.BlockSpec((C, t_blk), lambda i, std: (0, i)),  # noise z
            ],
            out_specs=pl.BlockSpec((C, t_blk), lambda i, std: (0, i)),
        ),
        compiler_params=pltpu.CompilerParams(
            dimension_semantics=("parallel",),  # tiles independent -> megacore on v7x
        ),
    )(noise_std, signal, z)


if __name__ == "__main__":
    key = jax.random.PRNGKey(0)
    k_sig, k_noise = jax.random.split(key)

    # Small waveform: [channels=8, time=2048]; tile over time with T_BLK=512.
    signal = jax.random.normal(k_sig, (8, 2048), dtype=jnp.float32)

    out = add_gaussian_noise_snr(signal, k_noise, snr_db=2.0, p=1.0, block_time=512)
    out = jax.block_until_ready(out)

    # Sanity checks: shape/dtype preserved, noise added with ~ the requested SNR.
    assert out.shape == signal.shape and out.dtype == jnp.float32
    sig_p = float(jnp.mean(signal ** 2))
    noise_p = float(jnp.mean((out - signal) ** 2))
    expected_noise_p = sig_p / (10.0 ** (2.0 / 10.0))
    assert noise_p > 0.0, "no noise was added"
    assert 0.7 * expected_noise_p < noise_p < 1.4 * expected_noise_p, (
        noise_p, expected_noise_p)

    print("KERNEL_OK")
</pallas_src>

<mosaic_0001>
module attributes {stable_mosaic.version = 11 : i64} {
  func.func @_add_scaled_noise_kernel(%arg0: i32, %arg1: memref<1xf32, #tpu.memory_space<smem>>, %arg2: memref<8x512xf32, #tpu.memory_space<vmem>>, %arg3: memref<8x512xf32, #tpu.memory_space<vmem>>, %arg4: memref<8x512xf32, #tpu.memory_space<vmem>>) attributes {dimension_semantics = [#tpu.dimension_semantics<parallel>], iteration_bounds = array<i64: 4>, scalar_prefetch = 1 : i64, scratch_operands = 0 : i64, tpu.core_type = #tpu.core_type<tc>, window_params = [{transform_indices = @transform_0, window_bounds = array<i64: 8, 512>}, {transform_indices = @transform_1, window_bounds = array<i64: 8, 512>}, {transform_indices = @transform_2, window_bounds = array<i64: 8, 512>}]} {
    %c0 = arith.constant 0 : index
    %c0_0 = arith.constant 0 : index
    %0 = vector.load %arg2[%c0, %c0_0] : memref<8x512xf32, #tpu.memory_space<vmem>>, vector<8x512xf32>
    %c0_1 = arith.constant 0 : index
    %1 = memref.load %arg1[%c0_1] : memref<1xf32, #tpu.memory_space<smem>>
    %c0_2 = arith.constant 0 : index
    %c0_3 = arith.constant 0 : index
    %2 = vector.load %arg3[%c0_2, %c0_3] : memref<8x512xf32, #tpu.memory_space<vmem>>, vector<8x512xf32>
    %3 = vector.broadcast %1 : f32 to vector<8x512xf32>
    %4 = arith.mulf %3, %2 : vector<8x512xf32>
    %5 = arith.addf %0, %4 : vector<8x512xf32>
    %c0_4 = arith.constant 0 : index
    %c0_5 = arith.constant 0 : index
    %6 = vector.load %arg4[%c0_4, %c0_5] : memref<8x512xf32, #tpu.memory_space<vmem>>, vector<8x512xf32>
    tpu.vector_store %arg4[%c0_4, %c0_5], %5 {strides = array<i32>} : memref<8x512xf32, #tpu.memory_space<vmem>>, vector<8x512xf32>,
    return
  }
  func.func @transform_0(%arg0: i32, %arg1: memref<1xf32, #tpu.memory_space<smem>>) -> (i32, i32) {
    %c0_i32 = arith.constant 0 : i32
    %c0_i32_0 = arith.constant 0 : i32
    return %c0_i32, %arg0 : i32, i32
  }
  func.func @transform_1(%arg0: i32, %arg1: memref<1xf32, #tpu.memory_space<smem>>) -> (i32, i32) {
    %c0_i32 = arith.constant 0 : i32
    %c0_i32_0 = arith.constant 0 : i32
    return %c0_i32, %arg0 : i32, i32
  }
  func.func @transform_2(%arg0: i32, %arg1: memref<1xf32, #tpu.memory_space<smem>>) -> (i32, i32) {
    %c0_i32 = arith.constant 0 : i32
    %c0_i32_0 = arith.constant 0 : i32
    return %c0_i32, %arg0 : i32, i32
  }
}

</mosaic_0001>

<llo_original>
// kernel: tpu_custom_call.1
$region0: #{tpu_custom_call.1}
  #allocation0 [shape = 'u32[]', space=smem, size = 0x4, offset = 0x4, fixed_abs, tag = 'smem constant byte address 0x4 - core index']
  #allocation1 [shape = 'u32[144,128]{1,0:T(1,128)}', space=vmem, size = 0x12000, scoped, tag = 'internal scratch']
  #allocation2 [shape = 's32[1]{0}', space=sflag, size = 0x4, scoped, tag = 'scoped memory for tpu_custom_call.1']
  #allocation3 [shape = 'f32[1]{0:T(128)S(6)}', space=smem, size = 0x200, scoped, tag = 'prefetched SMEM operand 0']
  %s0 = inlined_call_operand.<no memory space> [shape: f32[1], index: 0, kind: input, shape index: {}]
  %s1 = inlined_call_operand.hbm [shape: f32[8,2048], index: 1, kind: input, shape index: {}]
  %s2 = inlined_call_operand.hbm [shape: f32[8,2048], index: 2, kind: input, shape index: {}]
  %s3 = inlined_call_operand.hbm [shape: f32[8,2048], index: 3, kind: output, shape index: {}]
  %s4 = sld [smem:[#allocation0]]
  $region49: #{tpu_custom_call.1} parent=0
    _
  %s6 = ssub.s32 1, %s4
  %s7 = scalar_select 0, %s6, %s4
  %8 = sst [smem:[#allocation3]] %s0
  $region1: #{tpu_custom_call.1} parent=0
    #allocation4 [shape = 'u8[32768]{0}', space=vmem, size = 0x8000, scoped, tag = 'input window, operand 1']
    #allocation5 [shape = 's32[2]{0}', space=sflag, size = 0x8, scoped, tag = 'scoped memory for tpu_custom_call.1']
    #allocation6 [shape = 's32[2]{0}', space=sflag, size = 0x8, scoped, tag = 'scoped memory for tpu_custom_call.1']
    #allocation7 [shape = 'u8[32768]{0}', space=vmem, size = 0x8000, scoped, tag = 'input window, operand 2']
    #allocation8 [shape = 's32[2]{0}', space=sflag, size = 0x8, scoped, tag = 'scoped memory for tpu_custom_call.1']
    #allocation9 [shape = 'u8[32768]{0}', space=vmem, size = 0x8000, scoped, tag = 'output window, operand 0']
    %9 = vsyncpa [#allocation5], 0
    %s10 = scalar_lea.sflag [#allocation5], 1
    %11 = vsyncpa %s10, 0
    %12 = vsyncpa [#allocation8], 0
    %s13 = scalar_lea.sflag [#allocation8], 1
    %14 = vsyncpa %s13, 0
    %15 = vsyncpa [#allocation6], 0
    %s16 = scalar_lea.sflag [#allocation6], 1
    %17 = vsyncpa %s16, 0
    loop: start=0, step=1, limit=6
    $region2: #{tpu_custom_call.1} parent=1 // loop_pre_header
      _
    $region3: #{tpu_custom_call.1} parent=1 // loop_header
      %s19 = sphi 0, %s23
      %p20 = scmp.ge.s32.totalorder %s19, 6
      %s29 = sphi 0, %s31
      %s32 = sphi 0, %s29
      %s33 = sphi 0, %s32
      %s49 = sphi 0, %s33
      %s55 = sphi 0, %s57
      %s58 = sphi 0, %s55
      %s59 = sphi 0, %s58
      %s75 = sphi 0, %s59
      %s81 = sphi 0, %s83
      %s84 = sphi 0, %s81
      %s85 = sphi 0, %s84
      %s101 = sphi 0, %s85
    $region4: #{tpu_custom_call.1} parent=1 // loop_header_branch
      %22 = sbr.rel (%p20) target = $region8
    $region5: #{tpu_custom_call.1} parent=1 // loop_body
      %s24 = ssub.s32 %s19, 1
      %s25 = ssub.s32 %s19, 2
      %s26 = sadd.s32 %s19, 1
      %s27 = ssub.s32 %s19, %s26
      %p28 = scmp.eq.s32.totalorder %s27, 0
      %s30 = sadd.s32 %s29, 1
      %s31 = scalar_select %p28, %s29, %s30
      %p34 = pneg %p28
      %p35 = scmp.eq.s32.totalorder %s19, 3
      %p36 = por %p34, %p35
      %p37 = scmp.ne.s32.totalorder %s29, %s32
      %p38 = scmp.eq.s32.totalorder %s19, 0
      %p39 = por %p37, %p38
      %p40 = scmp.ne.s32.totalorder %s29, %s32
      %p41 = scmp.eq.s32.totalorder %s24, 3
      %p42 = por %p40, %p41
      %p43 = scmp.ne.s32.totalorder %s32, %s33
      %p44 = scmp.eq.s32.totalorder %s24, 0
      %p45 = por %p43, %p44
      %p46 = scmp.ne.s32.totalorder %s32, %s33
      %p47 = scmp.eq.s32.totalorder %s25, 3
      %p48 = por %p46, %p47
      %p50 = scmp.ne.s32.totalorder %s33, %s49
      %p51 = scmp.eq.s32.totalorder %s25, 0
      %p52 = por %p50, %p51
      %s53 = ssub.s32 %s19, %s26
      %p54 = scmp.eq.s32.totalorder %s53, 0
      %s56 = sadd.s32 %s55, 1
      %s57 = scalar_select %p54, %s55, %s56
      %p60 = pneg %p54
      %p61 = scmp.eq.s32.totalorder %s19, 3
      %p62 = por %p60, %p61
      %p63 = scmp.ne.s32.totalorder %s55, %s58
      %p64 = scmp.eq.s32.totalorder %s19, 0
      %p65 = por %p63, %p64
      %p66 = scmp.ne.s32.totalorder %s55, %s58
      %p67 = scmp.eq.s32.totalorder %s24, 3
      %p68 = por %p66, %p67
      %p69 = scmp.ne.s32.totalorder %s58, %s59
      %p70 = scmp.eq.s32.totalorder %s24, 0
      %p71 = por %p69, %p70
      %p72 = scmp.ne.s32.totalorder %s58, %s59
      %p73 = scmp.eq.s32.totalorder %s25, 3
      %p74 = por %p72, %p73
      %p76 = scmp.ne.s32.totalorder %s59, %s75
      %p77 = scmp.eq.s32.totalorder %s25, 0
      %p78 = por %p76, %p77
      %s79 = ssub.s32 %s19, %s26
      %p80 = scmp.eq.s32.totalorder %s79, 0
      %s82 = sadd.s32 %s81, 1
      %s83 = scalar_select %p80, %s81, %s82
      %p86 = pneg %p80
      %p87 = scmp.eq.s32.totalorder %s19, 3
      %p88 = por %p86, %p87
      %p89 = scmp.ne.s32.totalorder %s81, %s84
      %p90 = scmp.eq.s32.totalorder %s19, 0
      %p91 = por %p89, %p90
      %p92 = scmp.ne.s32.totalorder %s81, %s84
      %p93 = scmp.eq.s32.totalorder %s24, 3
      %p94 = por %p92, %p93
      %p95 = scmp.ne.s32.totalorder %s84, %s85
      %p96 = scmp.eq.s32.totalorder %s24, 0
      %p97 = por %p95, %p96
      %p98 = scmp.ne.s32.totalorder %s84, %s85
      %p99 = scmp.eq.s32.totalorder %s25, 3
      %p100 = por %p98, %p99
      %p102 = scmp.ne.s32.totalorder %s85, %s101
      %p103 = scmp.eq.s32.totalorder %s25, 0
      %p104 = por %p102, %p103
      %p105 = scmp.le.s32.totalorder 1, %s19
      %p106 = scmp.lt.s32.totalorder %s19, 5
      %p107 = pnand %p105, %p106
      %p108 = pneg %p107
      // Predicated region
      $region9: #{tpu_custom_call.1} parent=5 // pred_check
        _
      $region10: #{tpu_custom_call.1} parent=5 // pred_check_branch
        %110 = sbr.rel (%p107) target = $region12
      $region11: #{tpu_custom_call.1} parent=5 // pred_region
        %s111 = ssub.s32 %s19, 1
      $region12: #{tpu_custom_call.1} parent=5 // pred_fallthru
        _
      %p112 = scmp.lt.s32.totalorder %s19, 4
      // Predicated region
      $region13: #{tpu_custom_call.1} parent=5 // pred_check
        %p113 = pneg %p112
      $region14: #{tpu_custom_call.1} parent=5 // pred_check_branch
        %115 = sbr.rel (%p113) target = $region16
      $region15: #{tpu_custom_call.1} parent=5 // pred_region
        // Predicated region
        $region17: #{tpu_custom_call.1} parent=15 // pred_check
          %p116 = pneg %p39
        $region18: #{tpu_custom_call.1} parent=15 // pred_check_branch
          %118 = sbr.rel (%p116) target = $region20
        $region19: #{tpu_custom_call.1} parent=15 // pred_region
          %s119 = sand.u32 %s29, 1
          %s120 = scalar_lea.sflag [#allocation5], %s119
          %s121 = sand.u32 %s29, 1
          %s122 = smul.addr %s121, 32
          %s123 = scalar_lea.vmem [#allocation4], %s122
          %s124 = smul.u32 4, %s19
          %s126 = ssub.s32 512, 512
          %127 = vsyncadd %s120, %s126
          %s128 = smul.addr %s124, 128
          %s129 = scalar_lea.hbm %s1, %s128
          %s131 = sshll.u32 %s123, 4
          %s132 = int_to_ptr.vmem [resolvable:$true] %s131
          %134 = dma.hbm_to_vmem [thread:$0]  %s129, 512, %s132, %s120
        $region20: #{tpu_custom_call.1} parent=15 // pred_fallthru
          _
        // Predicated region
        $region21: #{tpu_custom_call.1} parent=15 // pred_check
          %p135 = pneg %p65
        $region22: #{tpu_custom_call.1} parent=15 // pred_check_branch
          %137 = sbr.rel (%p135) target = $region24
        $region23: #{tpu_custom_call.1} parent=15 // pred_region
          %s138 = sand.u32 %s55, 1
          %s139 = scalar_lea.sflag [#allocation8], %s138
          %s140 = sand.u32 %s55, 1
          %s141 = smul.addr %s140, 32
          %s142 = scalar_lea.vmem [#allocation7], %s141
          %s143 = smul.u32 4, %s19
          %s145 = ssub.s32 512, 512
          %146 = vsyncadd %s139, %s145
          %s147 = smul.addr %s143, 128
          %s148 = scalar_lea.hbm %s2, %s147
          %s150 = sshll.u32 %s142, 4
          %s151 = int_to_ptr.vmem [resolvable:$true] %s150
          %153 = dma.hbm_to_vmem [thread:$0]  %s148, 512, %s151, %s139
        $region24: #{tpu_custom_call.1} parent=15 // pred_fallthru
          _
      $region16: #{tpu_custom_call.1} parent=5 // pred_fallthru
        _
      %p154 = scmp.le.s32.totalorder 1, %s19
      %p155 = scmp.lt.s32.totalorder %s19, 5
      %p156 = pnand %p154, %p155
      %p157 = pneg %p156
      // Predicated region
      $region25: #{tpu_custom_call.1} parent=5 // pred_check
        _
      $region26: #{tpu_custom_call.1} parent=5 // pred_check_branch
        %159 = sbr.rel (%p156) target = $region28
      $region27: #{tpu_custom_call.1} parent=5 // pred_region
        %s160 = ssub.s32 %s19, 1
        %s161 = sand.u32 %s32, 1
        %s162 = scalar_lea.sflag [#allocation5], %s161
        %s163 = sand.u32 %s32, 1
        %s164 = smul.addr %s163, 32
        %s165 = scalar_lea.vmem [#allocation4], %s164
        // Predicated region
        $region29: #{tpu_custom_call.1} parent=27 // pred_check
          %p166 = pneg %p45
        $region30: #{tpu_custom_call.1} parent=27 // pred_check_branch
          %168 = sbr.rel (%p166) target = $region32
        $region31: #{tpu_custom_call.1} parent=27 // pred_region
          %169 = dma.done %s162, 512
        $region32: #{tpu_custom_call.1} parent=27 // pred_fallthru
          _
        %s170 = sand.u32 %s58, 1
        %s171 = scalar_lea.sflag [#allocation8], %s170
        %s172 = sand.u32 %s58, 1
        %s173 = smul.addr %s172, 32
        %s174 = scalar_lea.vmem [#allocation7], %s173
        // Predicated region
        $region33: #{tpu_custom_call.1} parent=27 // pred_check
          %p175 = pneg %p71
        $region34: #{tpu_custom_call.1} parent=27 // pred_check_branch
          %177 = sbr.rel (%p175) target = $region36
        $region35: #{tpu_custom_call.1} parent=27 // pred_region
          %178 = dma.done %s171, 512
        $region36: #{tpu_custom_call.1} parent=27 // pred_fallthru
          _
        %s179 = sand.u32 %s32, 1
        %s180 = scalar_lea.sflag [#allocation5], %s179
        %s181 = sand.u32 %s32, 1
        %s182 = smul.addr %s181, 32
        %s183 = scalar_lea.vmem [#allocation4], %s182
        %p184 = pneg %p45
        %p185 = pneg %p42
        %s186 = sand.u32 %s58, 1
        %s187 = scalar_lea.sflag [#allocation8], %s186
        %s188 = sand.u32 %s58, 1
        %s189 = smul.addr %s188, 32
        %s190 = scalar_lea.vmem [#allocation7], %s189
        %p191 = pneg %p71
        %p192 = pneg %p68
        %p193 = pneg %p97
        %p194 = pneg %p94
        %s195 = sand.u32 %s84, 1
        %s196 = scalar_lea.sflag [#allocation6], %s195
        %s197 = sand.u32 %s84, 1
        %s198 = smul.addr %s197, 32
        %s199 = scalar_lea.vmem [#allocation9], %s198
        %s200 = smul.u32 4, %s24
        %s201 = smul.u32 4, %s24
        %s202 = smul.u32 4, %s24
        %v203 = vld [vmem:[%s165] sm:$0xff]
        %v204 = vld [vmem:[%s165 + $0x8] sm:$0xff]
        %v205 = vld [vmem:[%s165 + $0x10] sm:$0xff]
        %v206 = vld [vmem:[%s165 + $0x18] sm:$0xff]
        %s207 = sld [smem:[#allocation3]]
        %v208 = vld [vmem:[%s174] sm:$0xff]
        %v209 = vld [vmem:[%s174 + $0x8] sm:$0xff]
        %v210 = vld [vmem:[%s174 + $0x10] sm:$0xff]
        %v211 = vld [vmem:[%s174 + $0x18] sm:$0xff]
        %v212 = vstv %s207
        %v213 = vmul.f32 %v212, %v208
        %v214 = vmul.f32 %v212, %v209
        %v215 = vmul.f32 %v212, %v210
        %v216 = vmul.f32 %v212, %v211
        %v217 = vadd.f32 %v203, %v213
        %v218 = vadd.f32 %v204, %v214
        %v219 = vadd.f32 %v205, %v215
        %v220 = vadd.f32 %v206, %v216
        %221 = vst [vmem:[%s199] sm:$0xff] %v217
        %222 = vst [vmem:[%s199 + $0x8] sm:$0xff] %v218
        %223 = vst [vmem:[%s199 + $0x10] sm:$0xff] %v219
        %224 = vst [vmem:[%s199 + $0x18] sm:$0xff] %v220
        %s225 = sand.u32 %s84, 1
        %s226 = scalar_lea.sflag [#allocation6], %s225
        %s227 = sand.u32 %s84, 1
        %s228 = smul.addr %s227, 32
        %s229 = scalar_lea.vmem [#allocation9], %s228
        // Predicated region
        $region37: #{tpu_custom_call.1} parent=27 // pred_check
          %p230 = pneg %p94
        $region38: #{tpu_custom_call.1} parent=27 // pred_check_branch
          %232 = sbr.rel (%p230) target = $region40
        $region39: #{tpu_custom_call.1} parent=27 // pred_region
          %s233 = smul.u32 4, %s24
          %s235 = ssub.s32 512, 512
          %236 = vsyncadd %s226, %s235
          %s237 = smul.addr %s233, 128
          %s238 = scalar_lea.hbm %s3, %s237
          %s240 = sshll.u32 %s229, 4
          %s241 = int_to_ptr.vmem [resolvable:$true] %s240
          %243 = dma.vmem_to_hbm [thread:$0]  %s241, 512, %s238, %s226
        $region40: #{tpu_custom_call.1} parent=27 // pred_fallthru
          _
      $region28: #{tpu_custom_call.1} parent=5 // pred_fallthru
        _
      %p244 = scmp.le.s32.totalorder 2, %s19
      // Predicated region
      $region41: #{tpu_custom_call.1} parent=5 // pred_check
        %p245 = pneg %p244
      $region42: #{tpu_custom_call.1} parent=5 // pred_check_branch
        %247 = sbr.rel (%p245) target = $region44
      $region43: #{tpu_custom_call.1} parent=5 // pred_region
        %s248 = ssub.s32 %s19, 2
        // Predicated region
        $region45: #{tpu_custom_call.1} parent=43 // pred_check
          %p249 = pneg %p100
        $region46: #{tpu_custom_call.1} parent=43 // pred_check_branch
          %251 = sbr.rel (%p249) target = $region48
        $region47: #{tpu_custom_call.1} parent=43 // pred_region
          %s252 = sand.u32 %s85, 1
          %s253 = scalar_lea.sflag [#allocation6], %s252
          %s254 = sand.u32 %s85, 1
          %s255 = smul.addr %s254, 32
          %s256 = scalar_lea.vmem [#allocation9], %s255
          %257 = dma.done %s253, 512
        $region48: #{tpu_custom_call.1} parent=43 // pred_fallthru
          _
      $region44: #{tpu_custom_call.1} parent=5 // pred_fallthru
        _
    $region6: #{tpu_custom_call.1} parent=1 // loop_footer
      %s23 = sadd.s32 1, %s19
    $region7: #{tpu_custom_call.1} parent=1 // loop_footer_branch
      %18 = sbr.rel target = $region3
    $region8: #{tpu_custom_call.1} parent=1 // loop_exit
      _
    %258 = vsyncpa [#allocation5], 1
    %s259 = scalar_lea.sflag [#allocation5], 1
    %260 = vsyncpa %s259, 1
    %261 = vsyncpa [#allocation8], 1
    %s262 = scalar_lea.sflag [#allocation8], 1
    %263 = vsyncpa %s262, 1
    %264 = vsyncpa [#allocation6], 1
    %s265 = scalar_lea.sflag [#allocation6], 1
    %266 = vsyncpa %s265, 1

</llo_original>
